<compile_context>
chip_gen: v5e
topology: v5e:2x2
jax: 0.10.0
libtpu: 0.0.40
codegen_flags: <defaults>
</compile_context>

<pallas_src>
import functools

import jax
import jax.numpy as jnp
from jax.experimental import pallas as pl
from jax.experimental.pallas import tpu as pltpu


def _round_up(v, m):
    return (v + m - 1) // m * m


def _row_topk_pool(vals, k, out_width):
    """Exact per-row top-k (multiset; duplicates counted with multiplicity).

    vals: (B, W) f32. Returns (B, out_width) f32 where lane i < k holds the
    (i+1)-th largest value of the row and lanes >= k are -inf. Each of the k
    passes removes the first occurrence of the current max, so the k-th
    largest is exact even with tied values. k is small/static -> unrolled.
    """
    work = vals
    width = work.shape[-1]
    lane = jax.lax.broadcasted_iota(jnp.int32, work.shape, 1)
    out = jnp.full((vals.shape[0], out_width), -jnp.inf, dtype=jnp.float32)
    out_lane = jax.lax.broadcasted_iota(jnp.int32, out.shape, 1)
    for i in range(k):
        m = jnp.max(work, axis=-1, keepdims=True)                     # (B, 1)
        first = jnp.min(jnp.where(work == m, lane, width),
                        axis=-1, keepdims=True)                       # (B, 1)
        out = jnp.where(out_lane == i, m, out)
        work = jnp.where(lane == first, -jnp.inf, work)
    return out


def _topk_sae_kernel(*refs, k, tied):
    """One (batch_tile, phase, hidden_tile) grid step.

    Refs (tied=True):  x, w_dec_tile, bias, sparse_out, recon_out, cand
    Refs (tied=False): x, w_dec_tile, w_encT_tile, bias, sparse_out, recon_out, cand

    x_ref:      (Bt, Dp)  input rows (matmul dtype), resident per batch tile
    wd_ref:     (Dp, Ht)  decoder weight tile
    we_ref:     (Dp, Ht)  encoder weight tile (== wd_ref when tied)
    b_ref:      (1,  Ht)  encoder bias tile (f32)
    sparse_ref: (Bt, Ht)  out: sparse (top-k) feature tile (written in phase 1)
    recon_ref:  (Bt, Dp)  out: reconstruction (resident accumulator)
    cand_ref:   (Bt, Cw)  scratch: running top-k value pool
    """
    if tied:
        x_ref, wd_ref, b_ref, sparse_ref, recon_ref, cand_ref = refs
        we_ref = wd_ref
    else:
        x_ref, wd_ref, we_ref, b_ref, sparse_ref, recon_ref, cand_ref = refs

    p = pl.program_id(1)          # 0 = encode + track top-k, 1 = mask + decode
    h = pl.program_id(2)          # hidden-tile index

    @pl.when((p == 0) & (h == 0))
    def _init():
        cand_ref[...] = jnp.full(cand_ref.shape, -jnp.inf, dtype=cand_ref.dtype)
        recon_ref[...] = jnp.zeros_like(recon_ref)

    # Encoder matmul for this hidden tile. Recomputed in phase 1 instead of
    # staging a (Bt, H_pad) feature scratch: VMEM stays strictly tile-bounded
    # and the extra MXU pass largely hides under the weight-tile DMA.
    feat = jnp.dot(x_ref[...], we_ref[...], preferred_element_type=jnp.float32)
    feat = jnp.maximum(feat + b_ref[...].astype(jnp.float32), 0.0)

    @pl.when(p == 0)
    def _track_topk():
        # Tile-local top-k first (small live set), then a narrow lane-aligned
        # merge with the running pool -> exact global top-k values per row.
        cand_w = cand_ref.shape[-1]
        local = _row_topk_pool(feat, k, cand_w)
        pool = jnp.concatenate([cand_ref[...], local], axis=-1)
        cand_ref[...] = _row_topk_pool(pool, k, cand_w)

    @pl.when(p == 1)
    def _mask_and_decode():
        cand = cand_ref[...]
        cand_lane = jax.lax.broadcasted_iota(jnp.int32, cand.shape, 1)
        # Exact k-th largest activation of the whole row.
        thresh = jnp.min(jnp.where(cand_lane < k, cand, jnp.inf),
                         axis=-1, keepdims=True)
        # TODO(synk): torch.topk index-order tie-breaking is not reproduced;
        # activations tied with the k-th largest are all kept (exact k otherwise).
        sparse = jnp.where(feat >= thresh, feat, 0.0)
        sparse_ref[...] = sparse.astype(sparse_ref.dtype)
        # Decoder: sparse @ W_dec.T, contracting the hidden dim of both
        # operands so the (Dp, Ht) decoder tile is used untransposed.
        # TODO(synk): verify with pl.lower_as_mlir that no per-step weight-tile
        # transpose is emitted; if so, transpose the smaller sparse tile instead.
        recon_ref[...] += jax.lax.dot_general(
            sparse.astype(wd_ref.dtype), wd_ref[...],
            dimension_numbers=(((1,), (1,)), ((), ())),
            preferred_element_type=jnp.float32).astype(recon_ref.dtype)


def topk_sae_forward(x, w_enc, b_enc, w_dec, k, *,
                     block_b=256, block_h=512,
                     matmul_dtype=jnp.bfloat16,
                     sparse_out_dtype=jnp.float32,
                     tied_weights=True,
                     vmem_limit_bytes=None):
    """Forward pass matching TopKSparseAutoencoder.forward.

    x: (B, input), w_enc: (hidden, input), b_enc: (hidden,), w_dec: (input, hidden).
    Returns (sparse_features (B, hidden), reconstruction (B, input)).

    tied_weights=True exploits initialize_weights() (encoder.weight ==
    decoder.weight.T): one (D, H) buffer is streamed and reused by both
    matmuls. Set tied_weights=False if the parameters have diverged.

    matmul_dtype=bf16 (default) feeds the MXU bf16 operands with f32
    accumulation; near ties the selected top-k support can differ from an
    all-f32 computation. Pass jnp.float32 for bit-faithful selection.
    On 128 MiB-VMEM parts (v5e/v6e) set block_h >= hidden_dim to keep the
    whole weight resident (it is then DMA'd from HBM only once per call).
    """
    B, D = x.shape
    Dw, H = w_dec.shape
    assert Dw == D and 1 <= k <= H
    if not tied_weights:
        assert w_enc.shape == (H, D)

    f32 = jnp.float32
    itemsize = jnp.dtype(matmul_dtype).itemsize

    # --- tile / padding choices --------------------------------------------
    sub = 16 if itemsize < 4 else 8               # sublane packing (bf16: 16)
    # TODO(synk): round lane dims to 256 on v6e/v7x (2x256^2 MXU) when padding
    # waste is acceptable; 128 keeps small shapes tight and is always legal.
    b_tile = _round_up(min(block_b, _round_up(B, sub)), sub)
    B_pad = _round_up(B, b_tile)
    # Only the batch axis is "parallel": keep >= 2 batch tiles when possible so
    # both v7x TensorCores get work.
    if B_pad // b_tile < 2 and b_tile >= 2 * sub:
        b_tile = _round_up(b_tile // 2, sub)
        B_pad = _round_up(B, b_tile)
    h_tile = _round_up(min(block_h, _round_up(H, 128)), 128)
    H_pad = _round_up(H, h_tile)
    D_pad = _round_up(D, 128)
    cand_w = max(128, _round_up(k, 128))          # running top-k pool width

    # --- operand padding / casting -----------------------------------------
    # NOTE: store parameters pre-padded / pre-cast in a real model so these
    # per-call pads and casts disappear from the forward path.
    def _pad2(a, rows, cols):
        a = jnp.asarray(a, f32)
        if a.shape != (rows, cols):
            a = jnp.pad(a, ((0, rows - a.shape[0]), (0, cols - a.shape[1])))
        return a

    xp = _pad2(x, B_pad, D_pad).astype(matmul_dtype)
    wdp = _pad2(w_dec, D_pad, H_pad).astype(matmul_dtype)
    bp = _pad2(jnp.asarray(b_enc, f32).reshape(1, H), 1, H_pad)

    operands = [xp, wdp]
    w_specs = [pl.BlockSpec((D_pad, h_tile), lambda b, p, h: (0, h))]
    if not tied_weights:
        wep = _pad2(jnp.asarray(w_enc, f32).T, D_pad, H_pad).astype(matmul_dtype)
        operands.append(wep)
        w_specs.append(pl.BlockSpec((D_pad, h_tile), lambda b, p, h: (0, h)))
    operands.append(bp)

    # --- VMEM budget derived from actual tile sizes -------------------------
    if vmem_limit_bytes is None:
        sp_b = jnp.dtype(sparse_out_dtype).itemsize
        n_w = 1 if tied_weights else 2
        est = (2 * b_tile * D_pad * itemsize            # x (double-buffered)
               + 2 * n_w * D_pad * h_tile * itemsize    # weight tile(s)
               + 2 * 8 * h_tile * 4                     # bias (sublane-padded)
               + 2 * b_tile * h_tile * sp_b             # sparse output tile
               + 2 * b_tile * D_pad * 4                 # recon accumulator
               + b_tile * cand_w * 4                    # top-k pool scratch
               + 8 * b_tile * h_tile * 4)               # in-flight compute headroom
        try:
            cap = pltpu.get_tpu_info().vmem_capacity_bytes
        except Exception:
            cap = 64 << 20                               # v7x per-TC physical
        vmem_limit_bytes = int(min(max(est + (8 << 20), 16 << 20), cap))

    grid = (B_pad // b_tile, 2, H_pad // h_tile)
    kernel = functools.partial(_topk_sae_kernel, k=k, tied=tied_weights)

    sparse_p, recon_p = pl.pallas_call(
        kernel,
        out_shape=(
            jax.ShapeDtypeStruct((B_pad, H_pad), sparse_out_dtype),
            jax.ShapeDtypeStruct((B_pad, D_pad), f32),
        ),
        grid_spec=pltpu.PrefetchScalarGridSpec(
            num_scalar_prefetch=0,
            grid=grid,
            in_specs=(
                # x rows: resident across phases/hidden tiles of a batch tile.
                [pl.BlockSpec((b_tile, D_pad), lambda b, p, h: (b, 0))]
                # streamed weight tile(s).
                # TODO(synk): sweep pipeline_mode=pl.Buffered(3) here once
                # tiles are fixed (v5e f32 weight DMA can be exposed).
                + w_specs
                # encoder bias tile.
                + [pl.BlockSpec((1, h_tile), lambda b, p, h: (0, h))]
            ),
            out_specs=(
                # Written only in phase 1; index stays (b, 0) through phase 0
                # so no never-written block is flushed to HBM.
                pl.BlockSpec((b_tile, h_tile), lambda b, p, h: (b, h * p)),
                # Resident accumulator: one HBM writeback per batch tile.
                pl.BlockSpec((b_tile, D_pad), lambda b, p, h: (b, 0)),
            ),
            scratch_shapes=[
                pltpu.VMEM((b_tile, cand_w), jnp.float32),   # running top-k pool
            ],
        ),
        compiler_params=pltpu.CompilerParams(
            dimension_semantics=("parallel", "arbitrary", "arbitrary"),
            vmem_limit_bytes=vmem_limit_bytes),
    )(*operands)

    return sparse_p[:B, :H], recon_p[:B, :D]


def _reference_forward(x, w_enc, b_enc, w_dec, k):
    """Pure-JAX reference mirroring the PyTorch forward."""
    features = jnp.maximum(x @ w_enc.T + b_enc, 0.0)
    vals, idx = jax.lax.top_k(features, k)
    sparse = jnp.zeros_like(features).at[
        jnp.arange(features.shape[0])[:, None], idx].set(vals)
    recon = sparse @ w_dec.T
    return sparse, recon


if __name__ == "__main__":
    # Small, module-consistent shapes that exercise multiple batch tiles,
    # multiple hidden tiles and the padding paths (D=48 -> 128, H=160 -> 256).
    batch, input_dim, hidden_dim, k = 16, 48, 160, 5

    key = jax.random.PRNGKey(0)
    k_x, k_dec, k_enc = jax.random.split(key, 3)

    # Mirrors initialize_weights(): decoder.weight (input, hidden),
    # encoder.weight = decoder.weight.T, encoder.bias = zeros.
    w_dec = jax.random.normal(k_dec, (input_dim, hidden_dim), jnp.float32) * (
        2.0 / input_dim) ** 0.5
    w_enc = w_dec.T                         # (hidden_dim, input_dim)
    b_enc = jnp.zeros((hidden_dim,), jnp.float32)
    x = jax.random.normal(k_x, (batch, input_dim), jnp.float32)

    # (1) Tied-weight path, f32 matmuls; small tiles only to exercise the
    # multi-batch-tile / multi-hidden-tile code paths (not a perf config).
    sparse, recon = topk_sae_forward(x, w_enc, b_enc, w_dec, k,
                                     block_b=8, block_h=128,
                                     matmul_dtype=jnp.float32)
    jax.block_until_ready((sparse, recon))
    ref_sparse, ref_recon = _reference_forward(x, w_enc, b_enc, w_dec, k)
    assert sparse.shape == (batch, hidden_dim)
    assert recon.shape == (batch, input_dim)
    assert jnp.allclose(sparse, ref_sparse, atol=1e-5, rtol=1e-5)
    assert jnp.allclose(recon, ref_recon, atol=1e-4, rtol=1e-4)
    # Each row keeps at most k non-zeros (continuous inputs => no ties).
    assert int(jnp.max(jnp.sum(sparse != 0, axis=1))) <= k

    # (2) Untied fallback path (encoder weight diverged from decoder.T).
    w_enc2 = w_enc + 0.01 * jax.random.normal(k_enc, w_enc.shape, jnp.float32)
    sparse2, recon2 = topk_sae_forward(x, w_enc2, b_enc, w_dec, k,
                                       block_b=8, block_h=128,
                                       matmul_dtype=jnp.float32,
                                       tied_weights=False)
    jax.block_until_ready((sparse2, recon2))
    ref_sparse2, ref_recon2 = _reference_forward(x, w_enc2, b_enc, w_dec, k)
    assert jnp.allclose(sparse2, ref_sparse2, atol=1e-5, rtol=1e-5)
    assert jnp.allclose(recon2, ref_recon2, atol=1e-4, rtol=1e-4)

    # (3) Default perf path (bf16 MXU operands, default tiles): smoke check
    # only — bf16 matmul rounding can legitimately shift top-k support near ties.
    sparse3, recon3 = topk_sae_forward(x, w_enc, b_enc, w_dec, k)
    jax.block_until_ready((sparse3, recon3))
    assert sparse3.shape == (batch, hidden_dim)
    assert recon3.shape == (batch, input_dim)
    assert bool(jnp.all(jnp.isfinite(sparse3)))
    assert bool(jnp.all(jnp.isfinite(recon3)))

    print("KERNEL_OK")
</pallas_src>

<mosaic_0001>
module attributes {stable_mosaic.version = 11 : i64} {
  func.func @_topk_sae_kernel(%arg0: i32, %arg1: i32, %arg2: i32, %arg3: memref<8x128xf32, #tpu.memory_space<vmem>>, %arg4: memref<128x128xf32, #tpu.memory_space<vmem>>, %arg5: memref<1x128xf32, #tpu.memory_space<vmem>>, %arg6: memref<8x128xf32, #tpu.memory_space<vmem>>, %arg7: memref<8x128xf32, #tpu.memory_space<vmem>>, %arg8: memref<8x128xf32, #tpu.memory_space<vmem>>) attributes {dimension_semantics = [#tpu.dimension_semantics<parallel>, #tpu.dimension_semantics<arbitrary>, #tpu.dimension_semantics<arbitrary>], iteration_bounds = array<i64: 2, 2, 2>, scalar_prefetch = 0 : i64, scratch_operands = 1 : i64, tpu.core_type = #tpu.core_type<tc>, window_params = [{transform_indices = @transform_0, window_bounds = array<i64: 8, 128>}, {transform_indices = @transform_1, window_bounds = array<i64: 128, 128>}, {transform_indices = @transform_2, window_bounds = array<i64: 1, 128>}, {transform_indices = @transform_3, window_bounds = array<i64: 8, 128>}, {transform_indices = @transform_4, window_bounds = array<i64: 8, 128>}]} {
    %c0_i32 = arith.constant 0 : i32
    %0 = arith.cmpi eq, %arg1, %c0_i32 : i32
    %c0_i32_0 = arith.constant 0 : i32
    %1 = arith.cmpi eq, %arg2, %c0_i32_0 : i32
    %2 = arith.andi %0, %1 : i1
    %3 = arith.extui %2 : i1 to i32
    %c0_i32_1 = arith.constant 0 : i32
    %4 = arith.cmpi ne, %3, %c0_i32_1 : i32
    scf.if %4 {
      %cst_11 = arith.constant 0xFF800000 : f32
      %19 = vector.broadcast %cst_11 : f32 to vector<8x128xf32>
      %c0_12 = arith.constant 0 : index
      %c0_13 = arith.constant 0 : index
      %20 = vector.load %arg8[%c0_12, %c0_13] : memref<8x128xf32, #tpu.memory_space<vmem>>, vector<8x128xf32>
      tpu.vector_store %arg8[%c0_12, %c0_13], %19 {strides = array<i32>} : memref<8x128xf32, #tpu.memory_space<vmem>>, vector<8x128xf32>,
      %cst_14 = arith.constant 0.000000e+00 : f32
      %21 = vector.broadcast %cst_14 : f32 to vector<8x128xf32>
      %c0_15 = arith.constant 0 : index
      %c0_16 = arith.constant 0 : index
      %22 = vector.load %arg7[%c0_15, %c0_16] : memref<8x128xf32, #tpu.memory_space<vmem>>, vector<8x128xf32>
      tpu.vector_store %arg7[%c0_15, %c0_16], %21 {strides = array<i32>} : memref<8x128xf32, #tpu.memory_space<vmem>>, vector<8x128xf32>,
    } else {
    }
    %c0 = arith.constant 0 : index
    %c0_2 = arith.constant 0 : index
    %5 = vector.load %arg3[%c0, %c0_2] : memref<8x128xf32, #tpu.memory_space<vmem>>, vector<8x128xf32>
    %c0_3 = arith.constant 0 : index
    %c0_4 = arith.constant 0 : index
    %6 = vector.load %arg4[%c0_3, %c0_4] : memref<128x128xf32, #tpu.memory_space<vmem>>, vector<128x128xf32>
    %cst = arith.constant dense<0.000000e+00> : vector<8x128xf32>
    %7 = tpu.matmul %5, %6, %cst {dimension_numbers = #tpu.dot_dimension_numbers<[1], [0], [0], [1], [0, 0, 1, 1], [], []>} : vector<8x128xf32>, vector<128x128xf32>, vector<8x128xf32> -> vector<8x128xf32>
    %c0_5 = arith.constant 0 : index
    %c0_6 = arith.constant 0 : index
    %8 = vector.load %arg5[%c0_5, %c0_6] : memref<1x128xf32, #tpu.memory_space<vmem>>, vector<1x128xf32>
    %9 = vector.broadcast %8 : vector<1x128xf32> to vector<8x128xf32>
    %10 = arith.addf %7, %9 : vector<8x128xf32>
    %cst_7 = arith.constant 0.000000e+00 : f32
    %11 = vector.broadcast %cst_7 : f32 to vector<8x128xf32>
    %12 = arith.maximumf %10, %11 : vector<8x128xf32>
    %c0_i32_8 = arith.constant 0 : i32
    %13 = arith.cmpi eq, %arg1, %c0_i32_8 : i32
    %14 = arith.extui %13 : i1 to i32
    %c0_i32_9 = arith.constant 0 : i32
    %15 = arith.cmpi ne, %14, %c0_i32_9 : i32
    scf.if %15 {
      %19 = tpu.iota {dimensions = array<i32: 1>} : vector<8x128xi32>
      %cst_11 = arith.constant 0xFF800000 : f32
      %20 = vector.broadcast %cst_11 : f32 to vector<8x128xf32>
      %21 = tpu.iota {dimensions = array<i32: 1>} : vector<8x128xi32>
      %cst_12 = arith.constant dense<0xFF800000> : vector<8xf32>
      %22 = vector.multi_reduction <maximumf>, %12, %cst_12 [1] : vector<8x128xf32> to vector<8xf32>
      %23 = vector.shape_cast %22 : vector<8xf32> to vector<8x1xf32>
      %24 = vector.broadcast %23 : vector<8x1xf32> to vector<8x128xf32>
      %25 = arith.cmpf oeq, %12, %24 : vector<8x128xf32>
      %c128_i32 = arith.constant 128 : i32
      %26 = vector.broadcast %c128_i32 : i32 to vector<8x128xi32>
      %27 = arith.select %25, %19, %26 : vector<8x128xi1>, vector<8x128xi32>
      %cst_13 = arith.constant dense<2147483647> : vector<8xi32>
      %28 = vector.multi_reduction <minsi>, %27, %cst_13 [1] : vector<8x128xi32> to vector<8xi32>
      %29 = vector.shape_cast %28 : vector<8xi32> to vector<8x1xi32>
      %c0_i32_14 = arith.constant 0 : i32
      %30 = vector.broadcast %c0_i32_14 : i32 to vector<8x128xi32>
      %31 = arith.cmpi eq, %21, %30 : vector<8x128xi32>
      %32 = vector.shape_cast %23 : vector<8x1xf32> to vector<8x1xf32>
      %33 = vector.broadcast %32 : vector<8x1xf32> to vector<8x128xf32>
      %34 = arith.select %31, %33, %20 : vector<8x128xi1>, vector<8x128xf32>
      %35 = vector.broadcast %29 : vector<8x1xi32> to vector<8x128xi32>
      %36 = arith.cmpi eq, %19, %35 : vector<8x128xi32>
      %cst_15 = arith.constant 0xFF800000 : f32
      %37 = vector.broadcast %cst_15 : f32 to vector<8x128xf32>
      %38 = arith.select %36, %37, %12 : vector<8x128xi1>, vector<8x128xf32>
      %cst_16 = arith.constant dense<0xFF800000> : vector<8xf32>
      %39 = vector.multi_reduction <maximumf>, %38, %cst_16 [1] : vector<8x128xf32> to vector<8xf32>
      %40 = vector.shape_cast %39 : vector<8xf32> to vector<8x1xf32>
      %41 = vector.broadcast %40 : vector<8x1xf32> to vector<8x128xf32>
      %42 = arith.cmpf oeq, %38, %41 : vector<8x128xf32>
      %c128_i32_17 = arith.constant 128 : i32
      %43 = vector.broadcast %c128_i32_17 : i32 to vector<8x128xi32>
      %44 = arith.select %42, %19, %43 : vector<8x128xi1>, vector<8x128xi32>
      %cst_18 = arith.constant dense<2147483647> : vector<8xi32>
      %45 = vector.multi_reduction <minsi>, %44, %cst_18 [1] : vector<8x128xi32> to vector<8xi32>
      %46 = vector.shape_cast %45 : vector<8xi32> to vector<8x1xi32>
      %c1_i32_19 = arith.constant 1 : i32
      %47 = vector.broadcast %c1_i32_19 : i32 to vector<8x128xi32>
      %48 = arith.cmpi eq, %21, %47 : vector<8x128xi32>
      %49 = vector.shape_cast %40 : vector<8x1xf32> to vector<8x1xf32>
      %50 = vector.broadcast %49 : vector<8x1xf32> to vector<8x128xf32>
      %51 = arith.select %48, %50, %34 : vector<8x128xi1>, vector<8x128xf32>
      %52 = vector.broadcast %46 : vector<8x1xi32> to vector<8x128xi32>
      %53 = arith.cmpi eq, %19, %52 : vector<8x128xi32>
      %cst_20 = arith.constant 0xFF800000 : f32
      %54 = vector.broadcast %cst_20 : f32 to vector<8x128xf32>
      %55 = arith.select %53, %54, %38 : vector<8x128xi1>, vector<8x128xf32>
      %cst_21 = arith.constant dense<0xFF800000> : vector<8xf32>
      %56 = vector.multi_reduction <maximumf>, %55, %cst_21 [1] : vector<8x128xf32> to vector<8xf32>
      %57 = vector.shape_cast %56 : vector<8xf32> to vector<8x1xf32>
      %58 = vector.broadcast %57 : vector<8x1xf32> to vector<8x128xf32>
      %59 = arith.cmpf oeq, %55, %58 : vector<8x128xf32>
      %c128_i32_22 = arith.constant 128 : i32
      %60 = vector.broadcast %c128_i32_22 : i32 to vector<8x128xi32>
      %61 = arith.select %59, %19, %60 : vector<8x128xi1>, vector<8x128xi32>
      %cst_23 = arith.constant dense<2147483647> : vector<8xi32>
      %62 = vector.multi_reduction <minsi>, %61, %cst_23 [1] : vector<8x128xi32> to vector<8xi32>
      %63 = vector.shape_cast %62 : vector<8xi32> to vector<8x1xi32>
      %c2_i32 = arith.constant 2 : i32
      %64 = vector.broadcast %c2_i32 : i32 to vector<8x128xi32>
      %65 = arith.cmpi eq, %21, %64 : vector<8x128xi32>
      %66 = vector.shape_cast %57 : vector<8x1xf32> to vector<8x1xf32>
      %67 = vector.broadcast %66 : vector<8x1xf32> to vector<8x128xf32>
      %68 = arith.select %65, %67, %51 : vector<8x128xi1>, vector<8x128xf32>
      %69 = vector.broadcast %63 : vector<8x1xi32> to vector<8x128xi32>
      %70 = arith.cmpi eq, %19, %69 : vector<8x128xi32>
      %cst_24 = arith.constant 0xFF800000 : f32
      %71 = vector.broadcast %cst_24 : f32 to vector<8x128xf32>
      %72 = arith.select %70, %71, %55 : vector<8x128xi1>, vector<8x128xf32>
      %cst_25 = arith.constant dense<0xFF800000> : vector<8xf32>
      %73 = vector.multi_reduction <maximumf>, %72, %cst_25 [1] : vector<8x128xf32> to vector<8xf32>
      %74 = vector.shape_cast %73 : vector<8xf32> to vector<8x1xf32>
      %75 = vector.broadcast %74 : vector<8x1xf32> to vector<8x128xf32>
      %76 = arith.cmpf oeq, %72, %75 : vector<8x128xf32>
      %c128_i32_26 = arith.constant 128 : i32
      %77 = vector.broadcast %c128_i32_26 : i32 to vector<8x128xi32>
      %78 = arith.select %76, %19, %77 : vector<8x128xi1>, vector<8x128xi32>
      %cst_27 = arith.constant dense<2147483647> : vector<8xi32>
      %79 = vector.multi_reduction <minsi>, %78, %cst_27 [1] : vector<8x128xi32> to vector<8xi32>
      %80 = vector.shape_cast %79 : vector<8xi32> to vector<8x1xi32>
      %c3_i32 = arith.constant 3 : i32
      %81 = vector.broadcast %c3_i32 : i32 to vector<8x128xi32>
      %82 = arith.cmpi eq, %21, %81 : vector<8x128xi32>
      %83 = vector.shape_cast %74 : vector<8x1xf32> to vector<8x1xf32>
      %84 = vector.broadcast %83 : vector<8x1xf32> to vector<8x128xf32>
      %85 = arith.select %82, %84, %68 : vector<8x128xi1>, vector<8x128xf32>
      %86 = vector.broadcast %80 : vector<8x1xi32> to vector<8x128xi32>
      %87 = arith.cmpi eq, %19, %86 : vector<8x128xi32>
      %cst_28 = arith.constant 0xFF800000 : f32
      %88 = vector.broadcast %cst_28 : f32 to vector<8x128xf32>
      %89 = arith.select %87, %88, %72 : vector<8x128xi1>, vector<8x128xf32>
      %cst_29 = arith.constant dense<0xFF800000> : vector<8xf32>
      %90 = vector.multi_reduction <maximumf>, %89, %cst_29 [1] : vector<8x128xf32> to vector<8xf32>
      %91 = vector.shape_cast %90 : vector<8xf32> to vector<8x1xf32>
      %c4_i32 = arith.constant 4 : i32
      %92 = vector.broadcast %c4_i32 : i32 to vector<8x128xi32>
      %93 = arith.cmpi eq, %21, %92 : vector<8x128xi32>
      %94 = vector.shape_cast %91 : vector<8x1xf32> to vector<8x1xf32>
      %95 = vector.broadcast %94 : vector<8x1xf32> to vector<8x128xf32>
      %96 = arith.select %93, %95, %85 : vector<8x128xi1>, vector<8x128xf32>
      %c0_30 = arith.constant 0 : index
      %c0_31 = arith.constant 0 : index
      %97 = vector.load %arg8[%c0_30, %c0_31] : memref<8x128xf32, #tpu.memory_space<vmem>>, vector<8x128xf32>
      %98 = tpu.concatenate %97, %96 in 1 : vector<8x128xf32>, vector<8x128xf32> -> vector<8x256xf32>
      %99 = tpu.iota {dimensions = array<i32: 1>} : vector<8x256xi32>
      %cst_32 = arith.constant 0xFF800000 : f32
      %100 = vector.broadcast %cst_32 : f32 to vector<8x128xf32>
      %101 = tpu.iota {dimensions = array<i32: 1>} : vector<8x128xi32>
      %cst_33 = arith.constant dense<0xFF800000> : vector<8xf32>
      %102 = vector.multi_reduction <maximumf>, %98, %cst_33 [1] : vector<8x256xf32> to vector<8xf32>
      %103 = vector.shape_cast %102 : vector<8xf32> to vector<8x1xf32>
      %104 = vector.broadcast %103 : vector<8x1xf32> to vector<8x256xf32>
      %105 = arith.cmpf oeq, %98, %104 : vector<8x256xf32>
      %c256_i32 = arith.constant 256 : i32
      %106 = vector.broadcast %c256_i32 : i32 to vector<8x256xi32>
      %107 = arith.select %105, %99, %106 : vector<8x256xi1>, vector<8x256xi32>
      %cst_34 = arith.constant dense<2147483647> : vector<8xi32>
      %108 = vector.multi_reduction <minsi>, %107, %cst_34 [1] : vector<8x256xi32> to vector<8xi32>
      %109 = vector.shape_cast %108 : vector<8xi32> to vector<8x1xi32>
      %c0_i32_35 = arith.constant 0 : i32
      %110 = vector.broadcast %c0_i32_35 : i32 to vector<8x128xi32>
      %111 = arith.cmpi eq, %101, %110 : vector<8x128xi32>
      %112 = vector.shape_cast %103 : vector<8x1xf32> to vector<8x1xf32>
      %113 = vector.broadcast %112 : vector<8x1xf32> to vector<8x128xf32>
      %114 = arith.select %111, %113, %100 : vector<8x128xi1>, vector<8x128xf32>
      %115 = vector.broadcast %109 : vector<8x1xi32> to vector<8x256xi32>
      %116 = arith.cmpi eq, %99, %115 : vector<8x256xi32>
      %cst_36 = arith.constant 0xFF800000 : f32
      %117 = vector.broadcast %cst_36 : f32 to vector<8x256xf32>
      %118 = arith.select %116, %117, %98 : vector<8x256xi1>, vector<8x256xf32>
      %cst_37 = arith.constant dense<0xFF800000> : vector<8xf32>
      %119 = vector.multi_reduction <maximumf>, %118, %cst_37 [1] : vector<8x256xf32> to vector<8xf32>
      %120 = vector.shape_cast %119 : vector<8xf32> to vector<8x1xf32>
      %121 = vector.broadcast %120 : vector<8x1xf32> to vector<8x256xf32>
      %122 = arith.cmpf oeq, %118, %121 : vector<8x256xf32>
      %c256_i32_38 = arith.constant 256 : i32
      %123 = vector.broadcast %c256_i32_38 : i32 to vector<8x256xi32>
      %124 = arith.select %122, %99, %123 : vector<8x256xi1>, vector<8x256xi32>
      %cst_39 = arith.constant dense<2147483647> : vector<8xi32>
      %125 = vector.multi_reduction <minsi>, %124, %cst_39 [1] : vector<8x256xi32> to vector<8xi32>
      %126 = vector.shape_cast %125 : vector<8xi32> to vector<8x1xi32>
      %c1_i32_40 = arith.constant 1 : i32
      %127 = vector.broadcast %c1_i32_40 : i32 to vector<8x128xi32>
      %128 = arith.cmpi eq, %101, %127 : vector<8x128xi32>
      %129 = vector.shape_cast %120 : vector<8x1xf32> to vector<8x1xf32>
      %130 = vector.broadcast %129 : vector<8x1xf32> to vector<8x128xf32>
      %131 = arith.select %128, %130, %114 : vector<8x128xi1>, vector<8x128xf32>
      %132 = vector.broadcast %126 : vector<8x1xi32> to vector<8x256xi32>
      %133 = arith.cmpi eq, %99, %132 : vector<8x256xi32>
      %cst_41 = arith.constant 0xFF800000 : f32
      %134 = vector.broadcast %cst_41 : f32 to vector<8x256xf32>
      %135 = arith.select %133, %134, %118 : vector<8x256xi1>, vector<8x256xf32>
      %cst_42 = arith.constant dense<0xFF800000> : vector<8xf32>
      %136 = vector.multi_reduction <maximumf>, %135, %cst_42 [1] : vector<8x256xf32> to vector<8xf32>
      %137 = vector.shape_cast %136 : vector<8xf32> to vector<8x1xf32>
      %138 = vector.broadcast %137 : vector<8x1xf32> to vector<8x256xf32>
      %139 = arith.cmpf oeq, %135, %138 : vector<8x256xf32>
      %c256_i32_43 = arith.constant 256 : i32
      %140 = vector.broadcast %c256_i32_43 : i32 to vector<8x256xi32>
      %141 = arith.select %139, %99, %140 : vector<8x256xi1>, vector<8x256xi32>
      %cst_44 = arith.constant dense<2147483647> : vector<8xi32>
      %142 = vector.multi_reduction <minsi>, %141, %cst_44 [1] : vector<8x256xi32> to vector<8xi32>
      %143 = vector.shape_cast %142 : vector<8xi32> to vector<8x1xi32>
      %c2_i32_45 = arith.constant 2 : i32
      %144 = vector.broadcast %c2_i32_45 : i32 to vector<8x128xi32>
      %145 = arith.cmpi eq, %101, %144 : vector<8x128xi32>
      %146 = vector.shape_cast %137 : vector<8x1xf32> to vector<8x1xf32>
      %147 = vector.broadcast %146 : vector<8x1xf32> to vector<8x128xf32>
      %148 = arith.select %145, %147, %131 : vector<8x128xi1>, vector<8x128xf32>
      %149 = vector.broadcast %143 : vector<8x1xi32> to vector<8x256xi32>
      %150 = arith.cmpi eq, %99, %149 : vector<8x256xi32>
      %cst_46 = arith.constant 0xFF800000 : f32
      %151 = vector.broadcast %cst_46 : f32 to vector<8x256xf32>
      %152 = arith.select %150, %151, %135 : vector<8x256xi1>, vector<8x256xf32>
      %cst_47 = arith.constant dense<0xFF800000> : vector<8xf32>
      %153 = vector.multi_reduction <maximumf>, %152, %cst_47 [1] : vector<8x256xf32> to vector<8xf32>
      %154 = vector.shape_cast %153 : vector<8xf32> to vector<8x1xf32>
      %155 = vector.broadcast %154 : vector<8x1xf32> to vector<8x256xf32>
      %156 = arith.cmpf oeq, %152, %155 : vector<8x256xf32>
      %c256_i32_48 = arith.constant 256 : i32
      %157 = vector.broadcast %c256_i32_48 : i32 to vector<8x256xi32>
      %158 = arith.select %156, %99, %157 : vector<8x256xi1>, vector<8x256xi32>
      %cst_49 = arith.constant dense<2147483647> : vector<8xi32>
      %159 = vector.multi_reduction <minsi>, %158, %cst_49 [1] : vector<8x256xi32> to vector<8xi32>
      %160 = vector.shape_cast %159 : vector<8xi32> to vector<8x1xi32>
      %c3_i32_50 = arith.constant 3 : i32
      %161 = vector.broadcast %c3_i32_50 : i32 to vector<8x128xi32>
      %162 = arith.cmpi eq, %101, %161 : vector<8x128xi32>
      %163 = vector.shape_cast %154 : vector<8x1xf32> to vector<8x1xf32>
      %164 = vector.broadcast %163 : vector<8x1xf32> to vector<8x128xf32>
      %165 = arith.select %162, %164, %148 : vector<8x128xi1>, vector<8x128xf32>
      %166 = vector.broadcast %160 : vector<8x1xi32> to vector<8x256xi32>
      %167 = arith.cmpi eq, %99, %166 : vector<8x256xi32>
      %cst_51 = arith.constant 0xFF800000 : f32
      %168 = vector.broadcast %cst_51 : f32 to vector<8x256xf32>
      %169 = arith.select %167, %168, %152 : vector<8x256xi1>, vector<8x256xf32>
      %cst_52 = arith.constant dense<0xFF800000> : vector<8xf32>
      %170 = vector.multi_reduction <maximumf>, %169, %cst_52 [1] : vector<8x256xf32> to vector<8xf32>
      %171 = vector.shape_cast %170 : vector<8xf32> to vector<8x1xf32>
      %c4_i32_53 = arith.constant 4 : i32
      %172 = vector.broadcast %c4_i32_53 : i32 to vector<8x128xi32>
      %173 = arith.cmpi eq, %101, %172 : vector<8x128xi32>
      %174 = vector.shape_cast %171 : vector<8x1xf32> to vector<8x1xf32>
      %175 = vector.broadcast %174 : vector<8x1xf32> to vector<8x128xf32>
      %176 = arith.select %173, %175, %165 : vector<8x128xi1>, vector<8x128xf32>
      %c0_54 = arith.constant 0 : index
      %c0_55 = arith.constant 0 : index
      %177 = vector.load %arg8[%c0_54, %c0_55] : memref<8x128xf32, #tpu.memory_space<vmem>>, vector<8x128xf32>
      tpu.vector_store %arg8[%c0_54, %c0_55], %176 {strides = array<i32>} : memref<8x128xf32, #tpu.memory_space<vmem>>, vector<8x128xf32>,
    } else {
    }
    %c1_i32 = arith.constant 1 : i32
    %16 = arith.cmpi eq, %arg1, %c1_i32 : i32
    %17 = arith.extui %16 : i1 to i32
    %c0_i32_10 = arith.constant 0 : i32
    %18 = arith.cmpi ne, %17, %c0_i32_10 : i32
    scf.if %18 {
      %c0_11 = arith.constant 0 : index
      %c0_12 = arith.constant 0 : index
      %19 = vector.load %arg8[%c0_11, %c0_12] : memref<8x128xf32, #tpu.memory_space<vmem>>, vector<8x128xf32>
      %20 = tpu.iota {dimensions = array<i32: 1>} : vector<8x128xi32>
      %c5_i32 = arith.constant 5 : i32
      %21 = vector.broadcast %c5_i32 : i32 to vector<8x128xi32>
      %22 = arith.cmpi slt, %20, %21 : vector<8x128xi32>
      %cst_13 = arith.constant 0x7F800000 : f32
      %23 = vector.broadcast %cst_13 : f32 to vector<8x128xf32>
      %24 = arith.select %22, %19, %23 : vector<8x128xi1>, vector<8x128xf32>
      %cst_14 = arith.constant dense<0x7F800000> : vector<8xf32>
      %25 = vector.multi_reduction <minimumf>, %24, %cst_14 [1] : vector<8x128xf32> to vector<8xf32>
      %26 = vector.shape_cast %25 : vector<8xf32> to vector<8x1xf32>
      %27 = vector.broadcast %26 : vector<8x1xf32> to vector<8x128xf32>
      %28 = arith.cmpf oge, %12, %27 : vector<8x128xf32>
      %cst_15 = arith.constant 0.000000e+00 : f32
      %29 = vector.broadcast %cst_15 : f32 to vector<8x128xf32>
      %30 = arith.select %28, %12, %29 : vector<8x128xi1>, vector<8x128xf32>
      %c0_16 = arith.constant 0 : index
      %c0_17 = arith.constant 0 : index
      %31 = vector.load %arg6[%c0_16, %c0_17] : memref<8x128xf32, #tpu.memory_space<vmem>>, vector<8x128xf32>
      tpu.vector_store %arg6[%c0_16, %c0_17], %30 {strides = array<i32>} : memref<8x128xf32, #tpu.memory_space<vmem>>, vector<8x128xf32>,
      %c0_18 = arith.constant 0 : index
      %c0_19 = arith.constant 0 : index
      %32 = vector.load %arg7[%c0_18, %c0_19] : memref<8x128xf32, #tpu.memory_space<vmem>>, vector<8x128xf32>
      %c0_20 = arith.constant 0 : index
      %c0_21 = arith.constant 0 : index
      %33 = vector.load %arg4[%c0_20, %c0_21] : memref<128x128xf32, #tpu.memory_space<vmem>>, vector<128x128xf32>
      %cst_22 = arith.constant dense<0.000000e+00> : vector<8x128xf32>
      %34 = tpu.matmul %30, %33, %cst_22 {dimension_numbers = #tpu.dot_dimension_numbers<[1], [1], [0], [0], [0, 0, 1, 0], [], []>} : vector<8x128xf32>, vector<128x128xf32>, vector<8x128xf32> -> vector<8x128xf32>
      %35 = arith.addf %32, %34 : vector<8x128xf32>
      %c0_23 = arith.constant 0 : index
      %c0_24 = arith.constant 0 : index
      %36 = vector.load %arg7[%c0_23, %c0_24] : memref<8x128xf32, #tpu.memory_space<vmem>>, vector<8x128xf32>
      tpu.vector_store %arg7[%c0_23, %c0_24], %35 {strides = array<i32>} : memref<8x128xf32, #tpu.memory_space<vmem>>, vector<8x128xf32>,
    } else {
    }
    return
  }
  func.func @transform_0(%arg0: i32, %arg1: i32, %arg2: i32) -> (i32, i32) {
    %c0_i32 = arith.constant 0 : i32
    %c0_i32_0 = arith.constant 0 : i32
    return %arg0, %c0_i32 : i32, i32
  }
  func.func @transform_1(%arg0: i32, %arg1: i32, %arg2: i32) -> (i32, i32) {
    %c0_i32 = arith.constant 0 : i32
    %c0_i32_0 = arith.constant 0 : i32
    return %c0_i32, %arg2 : i32, i32
  }
  func.func @transform_2(%arg0: i32, %arg1: i32, %arg2: i32) -> (i32, i32) {
    %c0_i32 = arith.constant 0 : i32
    %c0_i32_0 = arith.constant 0 : i32
    return %c0_i32, %arg2 : i32, i32
  }
  func.func @transform_3(%arg0: i32, %arg1: i32, %arg2: i32) -> (i32, i32) {
    %0 = arith.muli %arg2, %arg1 : i32
    %c0_i32 = arith.constant 0 : i32
    return %arg0, %0 : i32, i32
  }
  func.func @transform_4(%arg0: i32, %arg1: i32, %arg2: i32) -> (i32, i32) {
    %c0_i32 = arith.constant 0 : i32
    %c0_i32_0 = arith.constant 0 : i32
    return %arg0, %c0_i32 : i32, i32
  }
}

</mosaic_0001>

<llo_original>
// kernel: tpu_custom_call.1
$region0: #{tpu_custom_call.1}
  #allocation0 [shape = 'u32[]', space=smem, size = 0x4, offset = 0x4, fixed_abs, tag = 'smem constant byte address 0x4 - core index']
  #allocation1 [shape = 'u32[72,128]{1,0:T(1,128)}', space=vmem, size = 0x9000, scoped, tag = 'internal scratch']
  #allocation2 [shape = 'f32[8,128]{1,0:T(8,128)}', space=vmem, size = 0x1000, scoped, tag = 'scratch operand']
  %s0 = inlined_call_operand.hbm [shape: f32[16,128], index: 0, kind: input, shape index: {}]
  %s1 = inlined_call_operand.hbm [shape: f32[128,256], index: 1, kind: input, shape index: {}]
  %s2 = inlined_call_operand.hbm [shape: f32[1,256], index: 2, kind: input, shape index: {}]
  %s3 = inlined_call_operand.hbm [shape: f32[16,256], index: 3, kind: output, shape index: {0}]
  %s4 = inlined_call_operand.hbm [shape: f32[16,128], index: 4, kind: output, shape index: {1}]
  %5 = xla_tuple %s3, %s4
  %s6 = sld [smem:[#allocation0]]
  $region77: #{tpu_custom_call.1} parent=0
    _
  %s8 = ssub.s32 1, %s6
  %s9 = scalar_select 0, %s8, %s6
  $region1: #{tpu_custom_call.1} parent=0
    #allocation3 [shape = 'u8[8192]{0}', space=vmem, size = 0x2000, scoped, tag = 'input window, operand 0']
    #allocation4 [shape = 's32[2]{0}', space=sflag, size = 0x8, scoped, tag = 'scoped memory for tpu_custom_call.1']
    #allocation5 [shape = 's32[2]{0}', space=sflag, size = 0x8, scoped, tag = 'scoped memory for tpu_custom_call.1']
    #allocation6 [shape = 'u8[131072]{0}', space=vmem, size = 0x20000, scoped, tag = 'input window, operand 1']
    #allocation7 [shape = 's32[2]{0}', space=sflag, size = 0x8, scoped, tag = 'scoped memory for tpu_custom_call.1']
    #allocation8 [shape = 'u8[1024]{0}', space=vmem, size = 0x400, scoped, tag = 'input window, operand 2']
    #allocation9 [shape = 'u8[8192]{0}', space=vmem, size = 0x2000, scoped, tag = 'output window, operand 0']
    #allocation10 [shape = 'u8[8192]{0}', space=vmem, size = 0x2000, scoped, tag = 'output window, operand 1']
    #allocation11 [shape = 's32[2]{0}', space=sflag, size = 0x8, scoped, tag = 'scoped memory for tpu_custom_call.1']
    %10 = vsyncpa [#allocation4], 0
    %s11 = scalar_lea.sflag [#allocation4], 1
    %12 = vsyncpa %s11, 0
    %13 = vsyncpa [#allocation7], 0
    %s14 = scalar_lea.sflag [#allocation7], 1
    %15 = vsyncpa %s14, 0
    %16 = vsyncpa [#allocation5], 0
    %s17 = scalar_lea.sflag [#allocation5], 1
    %18 = vsyncpa %s17, 0
    %19 = vsyncpa [#allocation11], 0
    %s20 = scalar_lea.sflag [#allocation11], 1
    %21 = vsyncpa %s20, 0
    loop: start=0, step=1, limit=10
    $region2: #{tpu_custom_call.1} parent=1 // loop_pre_header
      _
    $region3: #{tpu_custom_call.1} parent=1 // loop_header
      %s23 = sphi 0, %s27
      %p24 = scmp.ge.s32.totalorder %s23, 10
      %s30 = sphi 0, %s49
      %s31 = sphi 0, %s45
      %s32 = sphi 0, %s41
      %s33 = sphi 0, %s30
      %s34 = sphi 0, %s31
      %s35 = sphi 0, %s32
      %s36 = sphi 0, %s33
      %s37 = sphi 0, %s34
      %s38 = sphi 0, %s35
      %s52 = sphi 0, %s54
      %s55 = sphi 0, %s52
      %s56 = sphi 0, %s55
      %s72 = sphi 0, %s56
      %s78 = sphi 0, %s80
      %s81 = sphi 0, %s78
      %s82 = sphi 0, %s81
      %s98 = sphi 0, %s82
      %s104 = sphi 0, %s106
      %s107 = sphi 0, %s104
      %s108 = sphi 0, %s107
      %s124 = sphi 0, %s108
      %s134 = sphi 0, %s136
      %s137 = sphi 0, %s134
      %s138 = sphi 0, %s137
      %s154 = sphi 0, %s138
      %s160 = sphi 0, %s162
      %s163 = sphi 0, %s160
      %s164 = sphi 0, %s163
      %s180 = sphi 0, %s164
    $region4: #{tpu_custom_call.1} parent=1 // loop_header_branch
      %26 = sbr.rel (%p24) target = $region8
    $region5: #{tpu_custom_call.1} parent=1 // loop_body
      %s28 = ssub.s32 %s23, 1
      %s29 = ssub.s32 %s23, 2
      %s39 = sadd.s32 1, %s32
      %p40 = scmp.ge.s32.totalorder %s39, 2
      %s41 = scalar_select %p40, 0, %s39
      %s42 = sadd.s32 1, %s31
      %s43 = scalar_select %p40, %s42, %s31
      %p44 = scmp.ge.s32.totalorder %s43, 2
      %s45 = scalar_select %p44, 0, %s43
      %s46 = sadd.s32 1, %s30
      %s47 = scalar_select %p44, %s46, %s30
      %p48 = scmp.ge.s32.totalorder %s47, 2
      %s49 = scalar_select %p48, 0, %s47
      %s50 = ssub.s32 %s30, %s49
      %p51 = scmp.eq.s32.totalorder %s50, 0
      %s53 = sadd.s32 %s52, 1
      %s54 = scalar_select %p51, %s52, %s53
      %p57 = pneg %p51
      %p58 = scmp.eq.s32.totalorder %s23, 7
      %p59 = por %p57, %p58
      %p60 = scmp.ne.s32.totalorder %s52, %s55
      %p61 = scmp.eq.s32.totalorder %s23, 0
      %p62 = por %p60, %p61
      %p63 = scmp.ne.s32.totalorder %s52, %s55
      %p64 = scmp.eq.s32.totalorder %s28, 7
      %p65 = por %p63, %p64
      %p66 = scmp.ne.s32.totalorder %s55, %s56
      %p67 = scmp.eq.s32.totalorder %s28, 0
      %p68 = por %p66, %p67
      %p69 = scmp.ne.s32.totalorder %s55, %s56
      %p70 = scmp.eq.s32.totalorder %s29, 7
      %p71 = por %p69, %p70
      %p73 = scmp.ne.s32.totalorder %s56, %s72
      %p74 = scmp.eq.s32.totalorder %s29, 0
      %p75 = por %p73, %p74
      %s76 = ssub.s32 %s32, %s41
      %p77 = scmp.eq.s32.totalorder %s76, 0
      %s79 = sadd.s32 %s78, 1
      %s80 = scalar_select %p77, %s78, %s79
      %p83 = pneg %p77
      %p84 = scmp.eq.s32.totalorder %s23, 7
      %p85 = por %p83, %p84
      %p86 = scmp.ne.s32.totalorder %s78, %s81
      %p87 = scmp.eq.s32.totalorder %s23, 0
      %p88 = por %p86, %p87
      %p89 = scmp.ne.s32.totalorder %s78, %s81
      %p90 = scmp.eq.s32.totalorder %s28, 7
      %p91 = por %p89, %p90
      %p92 = scmp.ne.s32.totalorder %s81, %s82
      %p93 = scmp.eq.s32.totalorder %s28, 0
      %p94 = por %p92, %p93
      %p95 = scmp.ne.s32.totalorder %s81, %s82
      %p96 = scmp.eq.s32.totalorder %s29, 7
      %p97 = por %p95, %p96
      %p99 = scmp.ne.s32.totalorder %s82, %s98
      %p100 = scmp.eq.s32.totalorder %s29, 0
      %p101 = por %p99, %p100
      %s102 = ssub.s32 %s32, %s41
      %p103 = scmp.eq.s32.totalorder %s102, 0
      %s105 = sadd.s32 %s104, 1
      %s106 = scalar_select %p103, %s104, %s105
      %p109 = pneg %p103
      %p110 = scmp.eq.s32.totalorder %s23, 7
      %p111 = por %p109, %p110
      %p112 = scmp.ne.s32.totalorder %s104, %s107
      %p113 = scmp.eq.s32.totalorder %s23, 0
      %p114 = por %p112, %p113
      %p115 = scmp.ne.s32.totalorder %s104, %s107
      %p116 = scmp.eq.s32.totalorder %s28, 7
      %p117 = por %p115, %p116
      %p118 = scmp.ne.s32.totalorder %s107, %s108
      %p119 = scmp.eq.s32.totalorder %s28, 0
      %p120 = por %p118, %p119
      %p121 = scmp.ne.s32.totalorder %s107, %s108
      %p122 = scmp.eq.s32.totalorder %s29, 7
      %p123 = por %p121, %p122
      %p125 = scmp.ne.s32.totalorder %s108, %s124
      %p126 = scmp.eq.s32.totalorder %s29, 0
      %p127 = por %p125, %p126
      %s128 = smul.u32 %s32, %s31
      %s129 = smul.u32 %s41, %s45
      %s130 = ssub.s32 %s30, %s49
      %s131 = ssub.s32 %s128, %s129
      %s132 = sor.u32 %s130, %s131
      %p133 = scmp.eq.s32.totalorder %s132, 0
      %s135 = sadd.s32 %s134, 1
      %s136 = scalar_select %p133, %s134, %s135
      %p139 = pneg %p133
      %p140 = scmp.eq.s32.totalorder %s23, 7
      %p141 = por %p139, %p140
      %p142 = scmp.ne.s32.totalorder %s134, %s137
      %p143 = scmp.eq.s32.totalorder %s23, 0
      %p144 = por %p142, %p143
      %p145 = scmp.ne.s32.totalorder %s134, %s137
      %p146 = scmp.eq.s32.totalorder %s28, 7
      %p147 = por %p145, %p146
      %p148 = scmp.ne.s32.totalorder %s137, %s138
      %p149 = scmp.eq.s32.totalorder %s28, 0
      %p150 = por %p148, %p149
      %p151 = scmp.ne.s32.totalorder %s137, %s138
      %p152 = scmp.eq.s32.totalorder %s29, 7
      %p153 = por %p151, %p152
      %p155 = scmp.ne.s32.totalorder %s138, %s154
      %p156 = scmp.eq.s32.totalorder %s29, 0
      %p157 = por %p155, %p156
      %s158 = ssub.s32 %s30, %s49
      %p159 = scmp.eq.s32.totalorder %s158, 0
      %s161 = sadd.s32 %s160, 1
      %s162 = scalar_select %p159, %s160, %s161
      %p165 = pneg %p159
      %p166 = scmp.eq.s32.totalorder %s23, 7
      %p167 = por %p165, %p166
      %p168 = scmp.ne.s32.totalorder %s160, %s163
      %p169 = scmp.eq.s32.totalorder %s23, 0
      %p170 = por %p168, %p169
      %p171 = scmp.ne.s32.totalorder %s160, %s163
      %p172 = scmp.eq.s32.totalorder %s28, 7
      %p173 = por %p171, %p172
      %p174 = scmp.ne.s32.totalorder %s163, %s164
      %p175 = scmp.eq.s32.totalorder %s28, 0
      %p176 = por %p174, %p175
      %p177 = scmp.ne.s32.totalorder %s163, %s164
      %p178 = scmp.eq.s32.totalorder %s29, 7
      %p179 = por %p177, %p178
      %p181 = scmp.ne.s32.totalorder %s164, %s180
      %p182 = scmp.eq.s32.totalorder %s29, 0
      %p183 = por %p181, %p182
      %p184 = scmp.le.s32.totalorder 1, %s23
      %p185 = scmp.lt.s32.totalorder %s23, 9
      %p186 = pnand %p184, %p185
      %p187 = pneg %p186
      // Predicated region
      $region9: #{tpu_custom_call.1} parent=5 // pred_check
        _
      $region10: #{tpu_custom_call.1} parent=5 // pred_check_branch
        %189 = sbr.rel (%p186) target = $region12
      $region11: #{tpu_custom_call.1} parent=5 // pred_region
        %s190 = ssub.s32 %s23, 1
      $region12: #{tpu_custom_call.1} parent=5 // pred_fallthru
        _
      %p191 = scmp.lt.s32.totalorder %s23, 8
      // Predicated region
      $region13: #{tpu_custom_call.1} parent=5 // pred_check
        %p192 = pneg %p191
      $region14: #{tpu_custom_call.1} parent=5 // pred_check_branch
        %194 = sbr.rel (%p192) target = $region16
      $region15: #{tpu_custom_call.1} parent=5 // pred_region
        // Predicated region
        $region17: #{tpu_custom_call.1} parent=15 // pred_check
          %p195 = pneg %p62
        $region18: #{tpu_custom_call.1} parent=15 // pred_check_branch
          %197 = sbr.rel (%p195) target = $region20
        $region19: #{tpu_custom_call.1} parent=15 // pred_region
          %s198 = sand.u32 %s52, 1
          %s199 = scalar_lea.sflag [#allocation4], %s198
          %s200 = sand.u32 %s52, 1
          %s201 = smul.addr %s200, 8
          %s202 = scalar_lea.vmem [#allocation3], %s201
          %204 = vsyncadd %s199, 0
          %s205 = smul.addr %s30, 8
          %s206 = scalar_lea.hbm %s0, %s205
          %s208 = sshll.u32 %s206, 4
          %s209 = int_to_ptr.hbm [resolvable:$true] %s208
          %s210 = sshll.u32 %s202, 4
          %s211 = int_to_ptr.vmem [resolvable:$true] %s210
          %213 = dma.hbm_to_vmem [thread:$0]  %s209, 128, %s211, %s199
        $region20: #{tpu_custom_call.1} parent=15 // pred_fallthru
          _
        // Predicated region
        $region21: #{tpu_custom_call.1} parent=15 // pred_check
          %p214 = pneg %p88
        $region22: #{tpu_custom_call.1} parent=15 // pred_check_branch
          %216 = sbr.rel (%p214) target = $region24
        $region23: #{tpu_custom_call.1} parent=15 // pred_region
          %s217 = sand.u32 %s23, 1
          %s218 = scalar_lea.sflag [#allocation7], %s217
          %s219 = sand.u32 %s78, 1
          %s220 = smul.addr %s219, 128
          %s221 = scalar_lea.vmem [#allocation6], %s220
          %223 = vsyncadd %s218, 0
          %s224 = smul.addr %s32, 8
          %s225 = scalar_lea.hbm %s1, %s224
          %s226 = sshll.u32 %s225, 4
          %s227 = int_to_ptr.hbm [resolvable:$true] %s226
          %s228 = sshll.u32 %s221, 4
          %s229 = int_to_ptr.vmem [resolvable:$true] %s228
          %234 = dma.hbm_to_vmem [thread:$0]  %s227, 2048, %s229, %s218, 256, 128, 8
        $region24: #{tpu_custom_call.1} parent=15 // pred_fallthru
          _
        // Predicated region
        $region25: #{tpu_custom_call.1} parent=15 // pred_check
          %p235 = pneg %p114
        $region26: #{tpu_custom_call.1} parent=15 // pred_check_branch
          %237 = sbr.rel (%p235) target = $region28
        $region27: #{tpu_custom_call.1} parent=15 // pred_region
          %s238 = sand.u32 %s23, 1
          %s239 = scalar_lea.sflag [#allocation7], %s238
          %s240 = sand.u32 %s104, 1
          %s241 = scalar_lea.vmem [#allocation8], %s240
          %243 = vsyncadd %s239, 0
          %s244 = scalar_lea.hbm %s2, %s32
          %s246 = sshll.u32 %s244, 4
          %s247 = int_to_ptr.hbm [resolvable:$true] %s246
          %s248 = sshll.u32 %s241, 4
          %s249 = int_to_ptr.vmem [resolvable:$true] %s248
          %251 = dma.hbm_to_vmem [thread:$0]  %s247, 16, %s249, %s239
        $region28: #{tpu_custom_call.1} parent=15 // pred_fallthru
          _
      $region16: #{tpu_custom_call.1} parent=5 // pred_fallthru
        _
      %p252 = scmp.le.s32.totalorder 1, %s23
      %p253 = scmp.lt.s32.totalorder %s23, 9
      %p254 = pnand %p252, %p253
      %p255 = pneg %p254
      // Predicated region
      $region29: #{tpu_custom_call.1} parent=5 // pred_check
        _
      $region30: #{tpu_custom_call.1} parent=5 // pred_check_branch
        %257 = sbr.rel (%p254) target = $region32
      $region31: #{tpu_custom_call.1} parent=5 // pred_region
        %s258 = ssub.s32 %s23, 1
        %s259 = sand.u32 %s55, 1
        %s260 = scalar_lea.sflag [#allocation4], %s259
        %s261 = sand.u32 %s55, 1
        %s262 = smul.addr %s261, 8
        %s263 = scalar_lea.vmem [#allocation3], %s262
        // Predicated region
        $region33: #{tpu_custom_call.1} parent=31 // pred_check
          %p264 = pneg %p68
        $region34: #{tpu_custom_call.1} parent=31 // pred_check_branch
          %266 = sbr.rel (%p264) target = $region36
        $region35: #{tpu_custom_call.1} parent=31 // pred_region
          %268 = dma.done %s260, 128
        $region36: #{tpu_custom_call.1} parent=31 // pred_fallthru
          _
        %s269 = sand.u32 %s28, 1
        %s270 = scalar_lea.sflag [#allocation7], %s269
        %s271 = sand.u32 %s81, 1
        %s272 = smul.addr %s271, 128
        %s273 = scalar_lea.vmem [#allocation6], %s272
        // Predicated region
        $region37: #{tpu_custom_call.1} parent=31 // pred_check
          %p274 = pneg %p94
        $region38: #{tpu_custom_call.1} parent=31 // pred_check_branch
          %276 = sbr.rel (%p274) target = $region40
        $region39: #{tpu_custom_call.1} parent=31 // pred_region
          %278 = dma.done %s270, 2048
        $region40: #{tpu_custom_call.1} parent=31 // pred_fallthru
          _
        %s279 = sand.u32 %s28, 1
        %s280 = scalar_lea.sflag [#allocation7], %s279
        %s281 = sand.u32 %s107, 1
        %s282 = scalar_lea.vmem [#allocation8], %s281
        // Predicated region
        $region41: #{tpu_custom_call.1} parent=31 // pred_check
          %p283 = pneg %p120
        $region42: #{tpu_custom_call.1} parent=31 // pred_check_branch
          %285 = sbr.rel (%p283) target = $region44
        $region43: #{tpu_custom_call.1} parent=31 // pred_region
          %287 = dma.done %s280, 16
        $region44: #{tpu_custom_call.1} parent=31 // pred_fallthru
          _
        %s288 = sand.u32 %s55, 1
        %s289 = scalar_lea.sflag [#allocation4], %s288
        %s290 = sand.u32 %s55, 1
        %s291 = smul.addr %s290, 8
        %s292 = scalar_lea.vmem [#allocation3], %s291
        %p293 = pneg %p68
        %p294 = pneg %p65
        %s295 = sand.u32 %s28, 1
        %s296 = scalar_lea.sflag [#allocation7], %s295
        %s297 = sand.u32 %s81, 1
        %s298 = smul.addr %s297, 128
        %s299 = scalar_lea.vmem [#allocation6], %s298
        %p300 = pneg %p94
        %p301 = pneg %p91
        %s302 = sand.u32 %s28, 1
        %s303 = scalar_lea.sflag [#allocation7], %s302
        %s304 = sand.u32 %s107, 1
        %s305 = scalar_lea.vmem [#allocation8], %s304
        %p306 = pneg %p120
        %p307 = pneg %p117
        %p308 = pneg %p150
        %p309 = pneg %p147
        %s310 = sand.u32 %s137, 1
        %s311 = scalar_lea.sflag [#allocation5], %s310
        %s312 = sand.u32 %s137, 1
        %s313 = smul.addr %s312, 8
        %s314 = scalar_lea.vmem [#allocation9], %s313
        %p315 = pneg %p176
        %p316 = pneg %p173
        %s317 = sand.u32 %s163, 1
        %s318 = scalar_lea.sflag [#allocation11], %s317
        %s319 = sand.u32 %s163, 1
        %s320 = smul.addr %s319, 8
        %s321 = scalar_lea.vmem [#allocation10], %s320
        %s322 = smul.u32 %s35, %s34
        %p323 = scmp.eq.s32.totalorder %s34, 0
        %p324 = scmp.eq.s32.totalorder %s35, 0
        %p325 = pnand %p323, %p324
        %p326 = pneg %p325
        // Predicated region
        $region45: #{tpu_custom_call.1} parent=31 // pred_check
          _
        $region46: #{tpu_custom_call.1} parent=31 // pred_check_branch
          %328 = sbr.rel (%p325) target = $region48
        $region47: #{tpu_custom_call.1} parent=31 // pred_region
          %329 = vst [vmem:[#allocation2] sm:$0xff] -inf
          %330 = vst [vmem:[%s321] sm:$0xff] 0.0
        $region48: #{tpu_custom_call.1} parent=31 // pred_fallthru
          _
        %v331 = vld [vmem:[%s263] sm:$0xff]
        %v332 = vld [vmem:[%s273] sm:$0xff]
        %v333 = vld [vmem:[%s273 + $0x8] sm:$0xff]
        %v334 = vld [vmem:[%s273 + $0x10] sm:$0xff]
        %v335 = vld [vmem:[%s273 + $0x18] sm:$0xff]
        %v336 = vld [vmem:[%s273 + $0x20] sm:$0xff]
        %v337 = vld [vmem:[%s273 + $0x28] sm:$0xff]
        %v338 = vld [vmem:[%s273 + $0x30] sm:$0xff]
        %v339 = vld [vmem:[%s273 + $0x38] sm:$0xff]
        %v340 = vld [vmem:[%s273 + $0x40] sm:$0xff]
        %v341 = vld [vmem:[%s273 + $0x48] sm:$0xff]
        %v342 = vld [vmem:[%s273 + $0x50] sm:$0xff]
        %v343 = vld [vmem:[%s273 + $0x58] sm:$0xff]
        %v344 = vld [vmem:[%s273 + $0x60] sm:$0xff]
        %v345 = vld [vmem:[%s273 + $0x68] sm:$0xff]
        %v346 = vld [vmem:[%s273 + $0x70] sm:$0xff]
        %v347 = vld [vmem:[%s273 + $0x78] sm:$0xff]
        %v348 = vld [vmem:[%s282] sm:$0x1]
        %v350 = vperm.slane %v348, 0
        %352 = vmatpush.msra.mxu0 %v347
        %353 = vmatpush.msra.mxu0 %v346
        %354 = vmatpush.msra.mxu0 %v345
        %355 = vmatpush.msra.mxu0 %v344
        %356 = vmatpush.msra.mxu0 %v343
        %357 = vmatpush.msra.mxu0 %v342
        %358 = vmatpush.msra.mxu0 %v341
        %359 = vmatpush.msra.mxu0 %v340
        %360 = vmatpush.msra.mxu0 %v339
        %361 = vmatpush.msra.mxu0 %v338
        %362 = vmatpush.msra.mxu0 %v337
        %363 = vmatpush.msra.mxu0 %v336
        %364 = vmatpush.msra.mxu0 %v335
        %365 = vmatpush.msra.mxu0 %v334
        %366 = vmatpush.msra.mxu0 %v333
        %367 = vmatpush.msra.mxu0 %v332
        %368 = vmatmul.f32.gmra.mxu0 %v331
        %v369 = vpop.f32.mrf.mxu0
        %v370 = vadd.f32 %v350, %v369
        %371 = vdwg.mxu0
        %v372 = vmax.f32 %v370, 0.0
        // Predicated region
        $region49: #{tpu_custom_call.1} parent=31 // pred_check
          %p373 = pneg %p323
        $region50: #{tpu_custom_call.1} parent=31 // pred_check_branch
          %375 = sbr.rel (%p373) target = $region52
        $region51: #{tpu_custom_call.1} parent=31 // pred_region
          %v376 = vlaneseq
          %v377 = vand.u32 %v376, 127
          %378 = vmax.xlane.f32.xlu0 %v372
          %v379 = vpop.xlane.xlu0 %378
          %vm380 = vcmp.eq.f32.partialorder %v372, %v379
          %v381 = vsel %vm380, %v377, 128
          %v382 = vand.u32 %v381, 65535
          %v383 = vshra.s32 %v381, 16
          %v384 = vcvt.s32.f32 %v382
          %v385 = vcvt.s32.f32 %v383
          %386 = vmin.xlane.f32.xlu0 %v385
          %v387 = vpop.xlane.xlu0 %386
          %vm388 = vcmp.eq.f32.partialorder %v385, %v387
          %v389 = vsel %vm388, %v384, inf
          %390 = vmin.xlane.f32.xlu0 %v389
          %v391 = vpop.xlane.xlu0 %390
          %v392 = vcvt.f32.s32 %v391
          %v393 = vcvt.f32.s32 %v387
          %v394 = vshll.u32 %v393, 16
          %v395 = vadd.s32 %v394, %v392
          %vm396 = vcmp.eq.s32.totalorder %v377, 0
          %v397 = vsel %vm396, %v379, -inf
          %vm398 = vcmp.eq.s32.totalorder %v377, %v395
          %v399 = vsel %vm398, -inf, %v372
          %400 = vmax.xlane.f32.xlu0 %v399
          %v401 = vpop.xlane.xlu0 %400
          %vm402 = vcmp.eq.f32.partialorder %v399, %v401
          %v403 = vsel %vm402, %v377, 128
          %v404 = vand.u32 %v403, 65535
          %v405 = vshra.s32 %v403, 16
          %v406 = vcvt.s32.f32 %v404
          %v407 = vcvt.s32.f32 %v405
          %408 = vmin.xlane.f32.xlu0 %v407
          %v409 = vpop.xlane.xlu0 %408
          %vm410 = vcmp.eq.f32.partialorder %v407, %v409
          %v411 = vsel %vm410, %v406, inf
          %412 = vmin.xlane.f32.xlu0 %v411
          %v413 = vpop.xlane.xlu0 %412
          %v414 = vcvt.f32.s32 %v413
          %v415 = vcvt.f32.s32 %v409
          %v416 = vshll.u32 %v415, 16
          %v417 = vadd.s32 %v416, %v414
          %vm418 = vcmp.eq.s32.totalorder %v377, 1
          %v419 = vsel %vm418, %v401, %v397
          %vm420 = vcmp.eq.s32.totalorder %v377, %v417
          %v421 = vsel %vm420, -inf, %v399
          %422 = vmax.xlane.f32.xlu0 %v421
          %v423 = vpop.xlane.xlu0 %422
          %vm424 = vcmp.eq.f32.partialorder %v421, %v423
          %v425 = vsel %vm424, %v377, 128
          %v426 = vand.u32 %v425, 65535
          %v427 = vshra.s32 %v425, 16
          %v428 = vcvt.s32.f32 %v426
          %v429 = vcvt.s32.f32 %v427
          %430 = vmin.xlane.f32.xlu0 %v429
          %v431 = vpop.xlane.xlu0 %430
          %vm432 = vcmp.eq.f32.partialorder %v429, %v431
          %v433 = vsel %vm432, %v428, inf
          %434 = vmin.xlane.f32.xlu0 %v433
          %v435 = vpop.xlane.xlu0 %434
          %v436 = vcvt.f32.s32 %v435
          %v437 = vcvt.f32.s32 %v431
          %v438 = vshll.u32 %v437, 16
          %v439 = vadd.s32 %v438, %v436
          %vm440 = vcmp.eq.s32.totalorder %v377, 2
          %v441 = vsel %vm440, %v423, %v419
          %vm442 = vcmp.eq.s32.totalorder %v377, %v439
          %v443 = vsel %vm442, -inf, %v421
          %444 = vmax.xlane.f32.xlu0 %v443
          %v445 = vpop.xlane.xlu0 %444
          %vm446 = vcmp.eq.f32.partialorder %v443, %v445
          %v447 = vsel %vm446, %v377, 128
          %v448 = vand.u32 %v447, 65535
          %v449 = vshra.s32 %v447, 16
          %v450 = vcvt.s32.f32 %v448
          %v451 = vcvt.s32.f32 %v449
          %452 = vmin.xlane.f32.xlu0 %v451
          %v453 = vpop.xlane.xlu0 %452
          %vm454 = vcmp.eq.f32.partialorder %v451, %v453
          %v455 = vsel %vm454, %v450, inf
          %456 = vmin.xlane.f32.xlu0 %v455
          %v457 = vpop.xlane.xlu0 %456
          %v458 = vcvt.f32.s32 %v457
          %v459 = vcvt.f32.s32 %v453
          %v460 = vshll.u32 %v459, 16
          %v461 = vadd.s32 %v460, %v458
          %vm462 = vcmp.eq.s32.totalorder %v377, 3
          %v463 = vsel %vm462, %v445, %v441
          %vm464 = vcmp.eq.s32.totalorder %v377, %v461
          %v465 = vsel %vm464, -inf, %v443
          %466 = vmax.xlane.f32.xlu0 %v465
          %v467 = vpop.xlane.xlu0 %466
          %vm468 = vcmp.eq.s32.totalorder %v377, 4
          %v469 = vsel %vm468, %v467, %v463
          %v470 = vld [vmem:[#allocation2] sm:$0xff]
          %v471 = vadd.s32 %v377, 128
          %v472 = vmax.f32 %v470, %v469
          %473 = vmax.xlane.f32.xlu0 %v472
          %v474 = vpop.xlane.xlu0 %473
          %vm475 = vcmp.eq.f32.partialorder %v470, %v474
          %vm476 = vcmp.eq.f32.partialorder %v469, %v474
          %v477 = vsel %vm475, %v377, 256
          %v478 = vsel %vm476, %v471, 256
          %vm479 = vcmp.lt.s32.totalorder %v477, %v478
          %v480 = vsel %vm479, %v477, %v478
          %v481 = vand.u32 %v480, 65535
          %v482 = vshra.s32 %v480, 16
          %v483 = vcvt.s32.f32 %v481
          %v484 = vcvt.s32.f32 %v482
          %485 = vmin.xlane.f32.xlu0 %v484
          %v486 = vpop.xlane.xlu0 %485
          %vm487 = vcmp.eq.f32.partialorder %v484, %v486
          %v488 = vsel %vm487, %v483, inf
          %489 = vmin.xlane.f32.xlu0 %v488
          %v490 = vpop.xlane.xlu0 %489
          %v491 = vcvt.f32.s32 %v490
          %v492 = vcvt.f32.s32 %v486
          %v493 = vshll.u32 %v492, 16
          %v494 = vadd.s32 %v493, %v491
          %v495 = vsel %vm396, %v474, -inf
          %vm496 = vcmp.eq.s32.totalorder %v377, %v494
          %vm497 = vcmp.eq.s32.totalorder %v471, %v494
          %v498 = vsel %vm496, -inf, %v470
          %v499 = vsel %vm497, -inf, %v469
          %v500 = vmax.f32 %v498, %v499
          %501 = vmax.xlane.f32.xlu0 %v500
          %v502 = vpop.xlane.xlu0 %501
          %vm503 = vcmp.eq.f32.partialorder %v498, %v502
          %vm504 = vcmp.eq.f32.partialorder %v499, %v502
          %v505 = vsel %vm503, %v377, 256
          %v506 = vsel %vm504, %v471, 256
          %vm507 = vcmp.lt.s32.totalorder %v505, %v506
          %v508 = vsel %vm507, %v505, %v506
          %v509 = vand.u32 %v508, 65535
          %v510 = vshra.s32 %v508, 16
          %v511 = vcvt.s32.f32 %v509
          %v512 = vcvt.s32.f32 %v510
          %513 = vmin.xlane.f32.xlu0 %v512
          %v514 = vpop.xlane.xlu0 %513
          %vm515 = vcmp.eq.f32.partialorder %v512, %v514
          %v516 = vsel %vm515, %v511, inf
          %517 = vmin.xlane.f32.xlu0 %v516
          %v518 = vpop.xlane.xlu0 %517
          %v519 = vcvt.f32.s32 %v518
          %v520 = vcvt.f32.s32 %v514
          %v521 = vshll.u32 %v520, 16
          %v522 = vadd.s32 %v521, %v519
          %v523 = vsel %vm418, %v502, %v495
          %vm524 = vcmp.eq.s32.totalorder %v377, %v522
          %vm525 = vcmp.eq.s32.totalorder %v471, %v522
          %v526 = vsel %vm524, -inf, %v498
          %v527 = vsel %vm525, -inf, %v499
          %v528 = vmax.f32 %v526, %v527
          %529 = vmax.xlane.f32.xlu0 %v528
          %v530 = vpop.xlane.xlu0 %529
          %vm531 = vcmp.eq.f32.partialorder %v526, %v530
          %vm532 = vcmp.eq.f32.partialorder %v527, %v530
          %v533 = vsel %vm531, %v377, 256
          %v534 = vsel %vm532, %v471, 256
          %vm535 = vcmp.lt.s32.totalorder %v533, %v534
          %v536 = vsel %vm535, %v533, %v534
          %v537 = vand.u32 %v536, 65535
          %v538 = vshra.s32 %v536, 16
          %v539 = vcvt.s32.f32 %v537
          %v540 = vcvt.s32.f32 %v538
          %541 = vmin.xlane.f32.xlu0 %v540
          %v542 = vpop.xlane.xlu0 %541
          %vm543 = vcmp.eq.f32.partialorder %v540, %v542
          %v544 = vsel %vm543, %v539, inf
          %545 = vmin.xlane.f32.xlu0 %v544
          %v546 = vpop.xlane.xlu0 %545
          %v547 = vcvt.f32.s32 %v546
          %v548 = vcvt.f32.s32 %v542
          %v549 = vshll.u32 %v548, 16
          %v550 = vadd.s32 %v549, %v547
          %v551 = vsel %vm440, %v530, %v523
          %vm552 = vcmp.eq.s32.totalorder %v377, %v550
          %vm553 = vcmp.eq.s32.totalorder %v471, %v550
          %v554 = vsel %vm552, -inf, %v526
          %v555 = vsel %vm553, -inf, %v527
          %v556 = vmax.f32 %v554, %v555
          %557 = vmax.xlane.f32.xlu0 %v556
          %v558 = vpop.xlane.xlu0 %557
          %vm559 = vcmp.eq.f32.partialorder %v554, %v558
          %vm560 = vcmp.eq.f32.partialorder %v555, %v558
          %v561 = vsel %vm559, %v377, 256
          %v562 = vsel %vm560, %v471, 256
          %vm563 = vcmp.lt.s32.totalorder %v561, %v562
          %v564 = vsel %vm563, %v561, %v562
          %v565 = vand.u32 %v564, 65535
          %v566 = vshra.s32 %v564, 16
          %v567 = vcvt.s32.f32 %v565
          %v568 = vcvt.s32.f32 %v566
          %569 = vmin.xlane.f32.xlu0 %v568
          %v570 = vpop.xlane.xlu0 %569
          %vm571 = vcmp.eq.f32.partialorder %v568, %v570
          %v572 = vsel %vm571, %v567, inf
          %573 = vmin.xlane.f32.xlu0 %v572
          %v574 = vpop.xlane.xlu0 %573
          %v575 = vcvt.f32.s32 %v574
          %v576 = vcvt.f32.s32 %v570
          %v577 = vshll.u32 %v576, 16
          %v578 = vadd.s32 %v577, %v575
          %v579 = vsel %vm462, %v558, %v551
          %vm580 = vcmp.eq.s32.totalorder %v377, %v578
          %vm581 = vcmp.eq.s32.totalorder %v471, %v578
          %v582 = vsel %vm580, -inf, %v554
          %v583 = vsel %vm581, -inf, %v555
          %v584 = vmax.f32 %v582, %v583
          %585 = vmax.xlane.f32.xlu0 %v584
          %v586 = vpop.xlane.xlu0 %585
          %v587 = vsel %vm468, %v586, %v579
          %588 = vst [vmem:[#allocation2] sm:$0xff] %v587
        $region52: #{tpu_custom_call.1} parent=31 // pred_fallthru
          _
        %p589 = scmp.eq.s32.totalorder %s34, 1
        // Predicated region
        $region53: #{tpu_custom_call.1} parent=31 // pred_check
          %p590 = pneg %p589
        $region54: #{tpu_custom_call.1} parent=31 // pred_check_branch
          %592 = sbr.rel (%p590) target = $region56
        $region55: #{tpu_custom_call.1} parent=31 // pred_region
          %v593 = vld [vmem:[#allocation2] sm:$0xff]
          %v594 = vlaneseq
          %v595 = vand.u32 %v594, 127
          %vm596 = vcmp.lt.s32.totalorder %v595, 5
          %v597 = vsel %vm596, %v593, inf
          %598 = vmin.xlane.f32.xlu0 %v597
          %v599 = vpop.xlane.xlu0 %598
          %vm600 = vcmp.ge.f32.partialorder %v372, %v599
          %v601 = vsel %vm600, %v372, 0.0
          %602 = vst [vmem:[%s314] sm:$0xff] %v601
          %v603 = vld [vmem:[%s321] sm:$0xff]
          %v604 = vld [vmem:[%s273] sm:$0xff]
          %v605 = vld [vmem:[%s273 + $0x8] sm:$0xff]
          %v606 = vld [vmem:[%s273 + $0x10] sm:$0xff]
          %v607 = vld [vmem:[%s273 + $0x18] sm:$0xff]
          %v608 = vld [vmem:[%s273 + $0x20] sm:$0xff]
          %v609 = vld [vmem:[%s273 + $0x28] sm:$0xff]
          %v610 = vld [vmem:[%s273 + $0x30] sm:$0xff]
          %v611 = vld [vmem:[%s273 + $0x38] sm:$0xff]
          %v612 = vld [vmem:[%s273 + $0x40] sm:$0xff]
          %v613 = vld [vmem:[%s273 + $0x48] sm:$0xff]
          %v614 = vld [vmem:[%s273 + $0x50] sm:$0xff]
          %v615 = vld [vmem:[%s273 + $0x58] sm:$0xff]
          %v616 = vld [vmem:[%s273 + $0x60] sm:$0xff]
          %v617 = vld [vmem:[%s273 + $0x68] sm:$0xff]
          %v618 = vld [vmem:[%s273 + $0x70] sm:$0xff]
          %v619 = vld [vmem:[%s273 + $0x78] sm:$0xff]
          %620 = vmatpush.xpose.msra.mxu0 %v619
          %621 = vmatpush.xpose.msra.mxu0 %v618
          %622 = vmatpush.xpose.msra.mxu0 %v617
          %623 = vmatpush.xpose.msra.mxu0 %v616
          %624 = vmatpush.xpose.msra.mxu0 %v615
          %625 = vmatpush.xpose.msra.mxu0 %v614
          %626 = vmatpush.xpose.msra.mxu0 %v613
          %627 = vmatpush.xpose.msra.mxu0 %v612
          %628 = vmatpush.xpose.msra.mxu0 %v611
          %629 = vmatpush.xpose.msra.mxu0 %v610
          %630 = vmatpush.xpose.msra.mxu0 %v609
          %631 = vmatpush.xpose.msra.mxu0 %v608
          %632 = vmatpush.xpose.msra.mxu0 %v607
          %633 = vmatpush.xpose.msra.mxu0 %v606
          %634 = vmatpush.xpose.msra.mxu0 %v605
          %635 = vmatpush.xpose.msra.mxu0 %v604
          %636 = vmatmul.f32.gmra.mxu0 %v601
          %v637 = vpop.f32.mrf.mxu0
          %v638 = vadd.f32 0.0, %v637
          %639 = vdwg.mxu0
          %v640 = vadd.f32 %v603, %v638
          %641 = vst [vmem:[%s321] sm:$0xff] %v640
        $region56: #{tpu_custom_call.1} parent=31 // pred_fallthru
          _
        %s642 = sand.u32 %s137, 1
        %s643 = scalar_lea.sflag [#allocation5], %s642
        %s644 = sand.u32 %s137, 1
        %s645 = smul.addr %s644, 8
        %s646 = scalar_lea.vmem [#allocation9], %s645
        %s647 = sand.u32 %s163, 1
        %s648 = scalar_lea.sflag [#allocation11], %s647
        %s649 = sand.u32 %s163, 1
        %s650 = smul.addr %s649, 8
        %s651 = scalar_lea.vmem [#allocation10], %s650
        // Predicated region
        $region57: #{tpu_custom_call.1} parent=31 // pred_check
          %p652 = pneg %p147
        $region58: #{tpu_custom_call.1} parent=31 // pred_check_branch
          %654 = sbr.rel (%p652) target = $region60
        $region59: #{tpu_custom_call.1} parent=31 // pred_region
          %s655 = smul.u32 %s35, %s34
          %657 = vsyncadd %s643, 0
          %s658 = smul.addr %s33, 2
          %s659 = sadd.s32 %s655, %s658
          %s660 = smul.addr %s659, 8
          %s661 = scalar_lea.hbm %s3, %s660
          %s663 = sshll.u32 %s646, 4
          %s664 = int_to_ptr.vmem [resolvable:$true] %s663
          %s665 = sshll.u32 %s661, 4
          %s666 = int_to_ptr.hbm [resolvable:$true] %s665
          %668 = dma.vmem_to_hbm [thread:$0]  %s664, 128, %s666, %s643
        $region60: #{tpu_custom_call.1} parent=31 // pred_fallthru
          _
        // Predicated region
        $region61: #{tpu_custom_call.1} parent=31 // pred_check
          %p669 = pneg %p173
        $region62: #{tpu_custom_call.1} parent=31 // pred_check_branch
          %671 = sbr.rel (%p669) target = $region64
        $region63: #{tpu_custom_call.1} parent=31 // pred_region
          %673 = vsyncadd %s648, 0
          %s674 = smul.addr %s33, 8
          %s675 = scalar_lea.hbm %s4, %s674
          %s677 = sshll.u32 %s651, 4
          %s678 = int_to_ptr.vmem [resolvable:$true] %s677
          %s679 = sshll.u32 %s675, 4
          %s680 = int_to_ptr.hbm [resolvable:$true] %s679
          %682 = dma.vmem_to_hbm [thread:$0]  %s678, 128, %s680, %s648
        $region64: #{tpu_custom_call.1} parent=31 // pred_fallthru
          _
      $region32: #{tpu_custom_call.1} parent=5 // pred_fallthru
        _
      %p683 = scmp.le.s32.totalorder 2, %s23
      // Predicated region
      $region65: #{tpu_custom_call.1} parent=5 // pred_check
        %p684 = pneg %p683
      $region66: #{tpu_custom_call.1} parent=5 // pred_check_branch
        %686 = sbr.rel (%p684) target = $region68
      $region67: #{tpu_custom_call.1} parent=5 // pred_region
        %s687 = ssub.s32 %s23, 2
        // Predicated region
        $region69: #{tpu_custom_call.1} parent=67 // pred_check
          %p688 = pneg %p153
        $region70: #{tpu_custom_call.1} parent=67 // pred_check_branch
          %690 = sbr.rel (%p688) target = $region72
        $region71: #{tpu_custom_call.1} parent=67 // pred_region
          %s691 = sand.u32 %s138, 1
          %s692 = scalar_lea.sflag [#allocation5], %s691
          %s693 = sand.u32 %s138, 1
          %s694 = smul.addr %s693, 8
          %s695 = scalar_lea.vmem [#allocation9], %s694
          %697 = dma.done %s692, 128
        $region72: #{tpu_custom_call.1} parent=67 // pred_fallthru
          _
        // Predicated region
        $region73: #{tpu_custom_call.1} parent=67 // pred_check
          %p698 = pneg %p179
        $region74: #{tpu_custom_call.1} parent=67 // pred_check_branch
          %700 = sbr.rel (%p698) target = $region76
        $region75: #{tpu_custom_call.1} parent=67 // pred_region
          %s701 = sand.u32 %s164, 1
          %s702 = scalar_lea.sflag [#allocation11], %s701
          %s703 = sand.u32 %s164, 1
          %s704 = smul.addr %s703, 8
          %s705 = scalar_lea.vmem [#allocation10], %s704
          %707 = dma.done %s702, 128
        $region76: #{tpu_custom_call.1} parent=67 // pred_fallthru
          _
      $region68: #{tpu_custom_call.1} parent=5 // pred_fallthru
        _
    $region6: #{tpu_custom_call.1} parent=1 // loop_footer
      %s27 = sadd.s32 1, %s23
    $region7: #{tpu_custom_call.1} parent=1 // loop_footer_branch
      %22 = sbr.rel target = $region3
    $region8: #{tpu_custom_call.1} parent=1 // loop_exit
      _
    %708 = vsyncpa [#allocation4], 1
    %s709 = scalar_lea.sflag [#allocation4], 1
    %710 = vsyncpa %s709, 1
    %711 = vsyncpa [#allocation7], 1
    %s712 = scalar_lea.sflag [#allocation7], 1
    %713 = vsyncpa %s712, 1
    %714 = vsyncpa [#allocation5], 1
    %s715 = scalar_lea.sflag [#allocation5], 1
    %716 = vsyncpa %s715, 1
    %717 = vsyncpa [#allocation11], 1
    %s718 = scalar_lea.sflag [#allocation11], 1
    %719 = vsyncpa %s718, 1

</llo_original>
